<compile_context>
chip_gen: v5e
topology: v5e:2x2
jax: 0.10.0
libtpu: 0.0.40
codegen_flags: <defaults>
</compile_context>

<pallas_src>
import jax
import jax.numpy as jnp
from jax.experimental import pallas as pl
from jax.experimental.pallas import tpu as pltpu


def coeffnet_kernel(x_ref, w1_ref, b1_ref, w2_ref, b2_ref, o_ref):
    # x_ref : (bt, 1)        float32   (batch on sublanes)
    # w1_ref: (1, 64)        float32   (Linear(1,64).weight, transposed row)
    # b1_ref: (1, 64)        float32
    # w2_ref: (64, n_coeff)  float32   (Linear(64,n_coeff).weight, transposed)
    # b2_ref: (1, n_coeff)   float32
    # o_ref : (bt, n_coeff)  float32   (row-major (B, n_coeff) block)
    x = x_ref[...]                                          # (bt, 1)
    # Layer 1: K=1 contraction -> VPU broadcast multiply-add, then tanh on EUP.
    h = jnp.tanh(x * w1_ref[...] + b1_ref[...])             # (bt, 64)
    # Layer 2: real MXU matmul, true-f32 precision, f32 accumulation.
    o_ref[...] = (
        jnp.dot(
            h,
            w2_ref[...],
            precision=jax.lax.Precision.HIGHEST,
            preferred_element_type=jnp.float32,
        )
        + b2_ref[...]
    )                                                       # (bt, n_coeff)


def coeffnet_forward(x, w1, b1, w2, b2, *, b_tile=8192):
    """Forward pass matching PyTorch CoeffNet.

    x : (B, 1) float32
    w1: (64, 1) float32        (nn.Linear(1, 64).weight)
    b1: (64,)  float32         (nn.Linear(1, 64).bias)
    w2: (n_coeff, 64) float32  (nn.Linear(64, n_coeff).weight)
    b2: (n_coeff,) float32     (nn.Linear(64, n_coeff).bias)
    returns (B, n_coeff) float32
    """
    B = x.shape[0]
    n_coeff = w2.shape[0]

    # Batch-on-sublanes layouts; weights reshaped once in the wrapper (tiny).
    x2 = x.reshape(B, 1).astype(jnp.float32)                 # (B, 1)
    w1r = w1.reshape(64, 1).T.astype(jnp.float32)            # (1, 64)
    b1r = b1.reshape(1, 64).astype(jnp.float32)              # (1, 64)
    w2t = w2.astype(jnp.float32).T                           # (64, n_coeff)
    b2r = b2.reshape(1, n_coeff).astype(jnp.float32)         # (1, n_coeff)

    # Tile the batch along sublanes.  Block == full dim is always legal; when
    # tiling, the sublane block only needs to be a multiple of 8 (ragged last
    # tile is padded/masked by Pallas).
    if B <= b_tile:
        bt = B
    else:
        bt = max(8, (b_tile // 8) * 8)
    grid = (pl.cdiv(B, bt),)

    cost = pl.CostEstimate(
        flops=int(B * (2 * 64 + 2 * 64 * n_coeff + n_coeff)),
        transcendentals=int(B * 64),
        bytes_accessed=int(4 * (B + B * n_coeff + 2 * 64 + 65 * n_coeff)),
    )

    out = pl.pallas_call(
        coeffnet_kernel,
        out_shape=jax.ShapeDtypeStruct((B, n_coeff), jnp.float32),
        grid=grid,
        in_specs=[
            pl.BlockSpec((bt, 1), lambda i: (i, 0)),          # x tile streams
            pl.BlockSpec((1, 64), lambda i: (0, 0)),          # weights stay resident
            pl.BlockSpec((1, 64), lambda i: (0, 0)),
            pl.BlockSpec((64, n_coeff), lambda i: (0, 0)),
            pl.BlockSpec((1, n_coeff), lambda i: (0, 0)),
        ],
        out_specs=pl.BlockSpec((bt, n_coeff), lambda i: (i, 0)),
        compiler_params=pltpu.CompilerParams(
            dimension_semantics=("parallel",),                 # dual-TC on v7x
            vmem_limit_bytes=48 * 1024 * 1024,                 # > default scoped VMEM,
                                                               # < v7x physical 64MiB
        ),
        cost_estimate=cost,
    )(x2, w1r, b1r, w2t, b2r)

    return out                                                 # (B, n_coeff)


def init_params(key, n_coeff):
    """PyTorch-style init (uniform +-1/sqrt(fan_in)), PyTorch weight layouts."""
    k1, k2, k3, k4 = jax.random.split(key, 4)
    bound1 = 1.0 / jnp.sqrt(1.0)    # fan_in = 1
    bound2 = 1.0 / jnp.sqrt(64.0)   # fan_in = 64
    w1 = jax.random.uniform(k1, (64, 1), jnp.float32, -bound1, bound1)
    b1 = jax.random.uniform(k2, (64,), jnp.float32, -bound1, bound1)
    w2 = jax.random.uniform(k3, (n_coeff, 64), jnp.float32, -bound2, bound2)
    b2 = jax.random.uniform(k4, (n_coeff,), jnp.float32, -bound2, bound2)
    return w1, b1, w2, b2


def _reference(x, w1, b1, w2, b2):
    # f32 reference matching PyTorch: broadcast layer 1, true-f32 layer-2 matmul.
    h = jnp.tanh(x * w1.reshape(64)[None, :] + b1[None, :])
    return (
        jnp.dot(h, w2.T, precision=jax.lax.Precision.HIGHEST,
                preferred_element_type=jnp.float32)
        + b2[None, :]
    )


if __name__ == "__main__":
    key = jax.random.PRNGKey(0)
    kp, kx1, kx2 = jax.random.split(key, 3)

    n_coeff = 8
    w1, b1, w2, b2 = init_params(kp, n_coeff)

    # Small batch (single tile; block == full array dims).
    batch = 16
    x = jax.random.normal(kx1, (batch, 1), jnp.float32)
    out = jax.block_until_ready(coeffnet_forward(x, w1, b1, w2, b2))
    ref = _reference(x, w1, b1, w2, b2)
    assert out.shape == (batch, n_coeff)
    assert jnp.allclose(out, ref, atol=1e-4, rtol=1e-4)

    # Non-multiple-of-tile batch with a small explicit tile to exercise the
    # gridded/pipelined path and ragged-last-tile padding/masking.
    batch2 = 1000
    x2 = jax.random.normal(kx2, (batch2, 1), jnp.float32)
    out2 = jax.block_until_ready(coeffnet_forward(x2, w1, b1, w2, b2, b_tile=256))
    ref2 = _reference(x2, w1, b1, w2, b2)
    assert out2.shape == (batch2, n_coeff)
    assert jnp.allclose(out2, ref2, atol=1e-4, rtol=1e-4)

    print("KERNEL_OK")
</pallas_src>

<mosaic_0001>
module attributes {stable_mosaic.version = 11 : i64} {
  func.func @coeffnet_kernel(%arg0: i32, %arg1: memref<16x1xf32, #tpu.memory_space<vmem>>, %arg2: memref<1x64xf32, #tpu.memory_space<vmem>>, %arg3: memref<1x64xf32, #tpu.memory_space<vmem>>, %arg4: memref<64x8xf32, #tpu.memory_space<vmem>>, %arg5: memref<1x8xf32, #tpu.memory_space<vmem>>, %arg6: memref<16x8xf32, #tpu.memory_space<vmem>>) attributes {dimension_semantics = [#tpu.dimension_semantics<parallel>], iteration_bounds = array<i64: 1>, scalar_prefetch = 0 : i64, scratch_operands = 0 : i64, tpu.core_type = #tpu.core_type<tc>, window_params = [{transform_indices = @transform_0, window_bounds = array<i64: 16, 1>}, {pipeline_mode = #tpu.pipeline_mode<synchronous>, transform_indices = @transform_1, window_bounds = array<i64: 1, 64>}, {pipeline_mode = #tpu.pipeline_mode<synchronous>, transform_indices = @transform_2, window_bounds = array<i64: 1, 64>}, {pipeline_mode = #tpu.pipeline_mode<synchronous>, transform_indices = @transform_3, window_bounds = array<i64: 64, 8>}, {pipeline_mode = #tpu.pipeline_mode<synchronous>, transform_indices = @transform_4, window_bounds = array<i64: 1, 8>}, {transform_indices = @transform_5, window_bounds = array<i64: 16, 8>}]} {
    %c0 = arith.constant 0 : index
    %c0_0 = arith.constant 0 : index
    %0 = vector.load %arg1[%c0, %c0_0] : memref<16x1xf32, #tpu.memory_space<vmem>>, vector<16x1xf32>
    %c0_1 = arith.constant 0 : index
    %c0_2 = arith.constant 0 : index
    %1 = vector.load %arg2[%c0_1, %c0_2] : memref<1x64xf32, #tpu.memory_space<vmem>>, vector<1x64xf32>
    %2 = vector.broadcast %0 : vector<16x1xf32> to vector<16x64xf32>
    %3 = vector.broadcast %1 : vector<1x64xf32> to vector<16x64xf32>
    %4 = arith.mulf %2, %3 : vector<16x64xf32>
    %c0_3 = arith.constant 0 : index
    %c0_4 = arith.constant 0 : index
    %5 = vector.load %arg3[%c0_3, %c0_4] : memref<1x64xf32, #tpu.memory_space<vmem>>, vector<1x64xf32>
    %6 = vector.broadcast %5 : vector<1x64xf32> to vector<16x64xf32>
    %7 = arith.addf %4, %6 : vector<16x64xf32>
    %8 = math.tanh %7 : vector<16x64xf32>
    %c0_5 = arith.constant 0 : index
    %c0_6 = arith.constant 0 : index
    %9 = vector.load %arg4[%c0_5, %c0_6] : memref<64x8xf32, #tpu.memory_space<vmem>>, vector<64x8xf32>
    %cst = arith.constant dense<0.000000e+00> : vector<16x8xf32>
    %10 = tpu.matmul %8, %9, %cst {dimension_numbers = #tpu.dot_dimension_numbers<[1], [0], [0], [1], [0, 0, 1, 1], [], []>, precision = #tpu.contract_precision<fp32>} : vector<16x64xf32>, vector<64x8xf32>, vector<16x8xf32> -> vector<16x8xf32>
    %c0_7 = arith.constant 0 : index
    %c0_8 = arith.constant 0 : index
    %11 = vector.load %arg5[%c0_7, %c0_8] : memref<1x8xf32, #tpu.memory_space<vmem>>, vector<1x8xf32>
    %12 = vector.broadcast %11 : vector<1x8xf32> to vector<16x8xf32>
    %13 = arith.addf %10, %12 : vector<16x8xf32>
    %c0_9 = arith.constant 0 : index
    %c0_10 = arith.constant 0 : index
    %14 = vector.load %arg6[%c0_9, %c0_10] : memref<16x8xf32, #tpu.memory_space<vmem>>, vector<16x8xf32>
    tpu.vector_store %arg6[%c0_9, %c0_10], %13 {strides = array<i32>} : memref<16x8xf32, #tpu.memory_space<vmem>>, vector<16x8xf32>,
    return
  }
  func.func @transform_0(%arg0: i32) -> (i32, i32) {
    %c0_i32 = arith.constant 0 : i32
    %c0_i32_0 = arith.constant 0 : i32
    return %arg0, %c0_i32 : i32, i32
  }
  func.func @transform_1(%arg0: i32) -> (i32, i32) {
    %c0_i32 = arith.constant 0 : i32
    %c0_i32_0 = arith.constant 0 : i32
    %c0_i32_1 = arith.constant 0 : i32
    return %c0_i32, %c0_i32_0 : i32, i32
  }
  func.func @transform_2(%arg0: i32) -> (i32, i32) {
    %c0_i32 = arith.constant 0 : i32
    %c0_i32_0 = arith.constant 0 : i32
    %c0_i32_1 = arith.constant 0 : i32
    return %c0_i32, %c0_i32_0 : i32, i32
  }
  func.func @transform_3(%arg0: i32) -> (i32, i32) {
    %c0_i32 = arith.constant 0 : i32
    %c0_i32_0 = arith.constant 0 : i32
    %c0_i32_1 = arith.constant 0 : i32
    return %c0_i32, %c0_i32_0 : i32, i32
  }
  func.func @transform_4(%arg0: i32) -> (i32, i32) {
    %c0_i32 = arith.constant 0 : i32
    %c0_i32_0 = arith.constant 0 : i32
    %c0_i32_1 = arith.constant 0 : i32
    return %c0_i32, %c0_i32_0 : i32, i32
  }
  func.func @transform_5(%arg0: i32) -> (i32, i32) {
    %c0_i32 = arith.constant 0 : i32
    %c0_i32_0 = arith.constant 0 : i32
    return %arg0, %c0_i32 : i32, i32
  }
}

</mosaic_0001>

<llo_original>
// kernel: tpu_custom_call.1
$region0: #{tpu_custom_call.1}
  #allocation0 [shape = 'u32[]', space=smem, size = 0x4, offset = 0x4, fixed_abs, tag = 'smem constant byte address 0x4 - core index']
  #allocation1 [shape = 'u32[72,128]{1,0:T(1,128)}', space=vmem, size = 0x9000, scoped, tag = 'internal scratch']
  %s0 = inlined_call_operand.vmem [shape: f32[16,1], index: 0, kind: input, shape index: {}]
  %s1 = inlined_call_operand.vmem [shape: f32[1,64], index: 1, kind: input, shape index: {}]
  %s2 = inlined_call_operand.vmem [shape: f32[1,64], index: 2, kind: input, shape index: {}]
  %s3 = inlined_call_operand.vmem [shape: f32[64,8], index: 3, kind: input, shape index: {}]
  %s4 = inlined_call_operand.vmem [shape: f32[1,8], index: 4, kind: input, shape index: {}]
  %s5 = inlined_call_operand.vmem [shape: f32[16,8], index: 5, kind: output, shape index: {}]
  %s6 = sld [smem:[#allocation0]]
  $region30: #{tpu_custom_call.1} parent=0
    _
  %s8 = ssub.s32 1, %s6
  %s9 = scalar_select 0, %s8, %s6
  // Predicated region
  $region2: #{tpu_custom_call.1} parent=0 // pred_check
    _
  $region3: #{tpu_custom_call.1} parent=0 // pred_check_branch
    %11 = sbr.rel (0) target = $region5
  $region4: #{tpu_custom_call.1} parent=0 // pred_region
    _
  $region5: #{tpu_custom_call.1} parent=0 // pred_fallthru
    _
  // Predicated region
  $region6: #{tpu_custom_call.1} parent=0 // pred_check
    _
  $region7: #{tpu_custom_call.1} parent=0 // pred_check_branch
    %13 = sbr.rel (0) target = $region9
  $region8: #{tpu_custom_call.1} parent=0 // pred_region
    _
  $region9: #{tpu_custom_call.1} parent=0 // pred_fallthru
    _
  // Predicated region
  $region10: #{tpu_custom_call.1} parent=0 // pred_check
    _
  $region11: #{tpu_custom_call.1} parent=0 // pred_check_branch
    %15 = sbr.rel (0) target = $region13
  $region12: #{tpu_custom_call.1} parent=0 // pred_region
    _
  $region13: #{tpu_custom_call.1} parent=0 // pred_fallthru
    _
  // Predicated region
  $region14: #{tpu_custom_call.1} parent=0 // pred_check
    _
  $region15: #{tpu_custom_call.1} parent=0 // pred_check_branch
    %17 = sbr.rel (0) target = $region17
  $region16: #{tpu_custom_call.1} parent=0 // pred_region
    _
  $region17: #{tpu_custom_call.1} parent=0 // pred_fallthru
    _
  // Predicated region
  $region18: #{tpu_custom_call.1} parent=0 // pred_check
    _
  $region19: #{tpu_custom_call.1} parent=0 // pred_check_branch
    %19 = sbr.rel (0) target = $region21
  $region20: #{tpu_custom_call.1} parent=0 // pred_region
    _
  $region21: #{tpu_custom_call.1} parent=0 // pred_fallthru
    _
  %v20 = vld [vmem:[%s0] sm:$0xff]
  %v21 = vld [vmem:[%s0 + $0x8] sm:$0xff]
  %v22 = vld [vmem:[%s1] sm:$0x1]
  %24 = vset.pattern.permute.xlu0 0
  %25 = vperm.xlu0 %24, %v20
  %v26 = vpop.permute.xlu0 %25
  %29 = vset.pattern.permute.xlu0 0
  %30 = vperm.xlu0 %29, %v21
  %v31 = vpop.permute.xlu0 %30
  %v34 = vperm.slane %v22, 0
  %v36 = vmul.f32 %v26, %v34
  %v37 = vmul.f32 %v31, %v34
  %v38 = vld [vmem:[%s2] sm:$0x1]
  %v40 = vperm.slane %v38, 0
  %v42 = vadd.f32 %v36, %v40
  %v43 = vadd.f32 %v37, %v40
  %v44 = vtanh.pop %v42
  %v45 = vtanh.pop %v43
  %v46 = vld [vmem:[%s3] sm:$0xff]
  %v47 = vld [vmem:[%s3 + $0x8] sm:$0xff]
  %v48 = vld [vmem:[%s3 + $0x10] sm:$0xff]
  %v49 = vld [vmem:[%s3 + $0x18] sm:$0xff]
  %v50 = vld [vmem:[%s3 + $0x20] sm:$0xff]
  %v51 = vld [vmem:[%s3 + $0x28] sm:$0xff]
  %v52 = vld [vmem:[%s3 + $0x30] sm:$0xff]
  %v53 = vld [vmem:[%s3 + $0x38] sm:$0xff]
  %v54 = vld [vmem:[%s4] sm:$0x1]
  %v56 = vperm.slane %v54, 0
  %vm58 = vcmask 523264
  %v60 = vsel %vm58, %v44, 0
  %v63 = vsel %vm58, %v45, 0
  %65 = vmatpush.msra.mxu0 0.0
  %66 = vmatpush.msra.mxu0 0.0
  %67 = vmatpush.msra.mxu0 0.0
  %68 = vmatpush.msra.mxu0 0.0
  %69 = vmatpush.msra.mxu0 0.0
  %70 = vmatpush.msra.mxu0 0.0
  %71 = vmatpush.msra.mxu0 0.0
  %72 = vmatpush.msra.mxu0 0.0
  %v73 = vand.u32 %v53, 4294901760
  %74 = vmatpush.msra.mxu0 %v73
  %v75 = vand.u32 %v52, 4294901760
  %76 = vmatpush.msra.mxu0 %v75
  %v77 = vand.u32 %v51, 4294901760
  %78 = vmatpush.msra.mxu0 %v77
  %v79 = vand.u32 %v50, 4294901760
  %80 = vmatpush.msra.mxu0 %v79
  %v81 = vand.u32 %v49, 4294901760
  %82 = vmatpush.msra.mxu0 %v81
  %v83 = vand.u32 %v48, 4294901760
  %84 = vmatpush.msra.mxu0 %v83
  %v85 = vand.u32 %v47, 4294901760
  %86 = vmatpush.msra.mxu0 %v85
  %v87 = vand.u32 %v46, 4294901760
  %88 = vmatpush.msra.mxu0 %v87
  %v89 = vand.u32 %v60, 4294901760
  %v90 = vsub.f32 %v60, %v89
  %v91 = vand.u32 %v90, 4294901760
  %v92 = vsub.f32 %v90, %v91
  %v93 = vand.u32 %v92, 4294901760
  %94 = vmatmul.f32.gmra.mxu0 %v93
  %v95 = vpop.f32.mrf.mxu0
  %v96 = vadd.f32 %v56, %v95
  %v97 = vand.u32 %v63, 4294901760
  %v98 = vsub.f32 %v63, %v97
  %v99 = vand.u32 %v98, 4294901760
  %v100 = vsub.f32 %v98, %v99
  %v101 = vand.u32 %v100, 4294901760
  %102 = vmatmul.f32.gmra.mxu0 %v101
  %v103 = vpop.f32.mrf.mxu0
  %v104 = vadd.f32 %v56, %v103
  %105 = vdwg.mxu0
  %106 = vmatpush.msra.mxu0 0.0
  %107 = vmatpush.msra.mxu0 0.0
  %108 = vmatpush.msra.mxu0 0.0
  %109 = vmatpush.msra.mxu0 0.0
  %110 = vmatpush.msra.mxu0 0.0
  %111 = vmatpush.msra.mxu0 0.0
  %112 = vmatpush.msra.mxu0 0.0
  %113 = vmatpush.msra.mxu0 0.0
  %v114 = vand.u32 %v53, 4294901760
  %v115 = vsub.f32 %v53, %v114
  %v116 = vand.u32 %v115, 4294901760
  %v117 = vsub.f32 %v115, %v116
  %v118 = vand.u32 %v117, 4294901760
  %119 = vmatpush.msra.mxu0 %v118
  %v120 = vand.u32 %v52, 4294901760
  %v121 = vsub.f32 %v52, %v120
  %v122 = vand.u32 %v121, 4294901760
  %v123 = vsub.f32 %v121, %v122
  %v124 = vand.u32 %v123, 4294901760
  %125 = vmatpush.msra.mxu0 %v124
  %v126 = vand.u32 %v51, 4294901760
  %v127 = vsub.f32 %v51, %v126
  %v128 = vand.u32 %v127, 4294901760
  %v129 = vsub.f32 %v127, %v128
  %v130 = vand.u32 %v129, 4294901760
  %131 = vmatpush.msra.mxu0 %v130
  %v132 = vand.u32 %v50, 4294901760
  %v133 = vsub.f32 %v50, %v132
  %v134 = vand.u32 %v133, 4294901760
  %v135 = vsub.f32 %v133, %v134
  %v136 = vand.u32 %v135, 4294901760
  %137 = vmatpush.msra.mxu0 %v136
  %v138 = vand.u32 %v49, 4294901760
  %v139 = vsub.f32 %v49, %v138
  %v140 = vand.u32 %v139, 4294901760
  %v141 = vsub.f32 %v139, %v140
  %v142 = vand.u32 %v141, 4294901760
  %143 = vmatpush.msra.mxu0 %v142
  %v144 = vand.u32 %v48, 4294901760
  %v145 = vsub.f32 %v48, %v144
  %v146 = vand.u32 %v145, 4294901760
  %v147 = vsub.f32 %v145, %v146
  %v148 = vand.u32 %v147, 4294901760
  %149 = vmatpush.msra.mxu0 %v148
  %v150 = vand.u32 %v47, 4294901760
  %v151 = vsub.f32 %v47, %v150
  %v152 = vand.u32 %v151, 4294901760
  %v153 = vsub.f32 %v151, %v152
  %v154 = vand.u32 %v153, 4294901760
  %155 = vmatpush.msra.mxu0 %v154
  %v156 = vand.u32 %v46, 4294901760
  %v157 = vsub.f32 %v46, %v156
  %v158 = vand.u32 %v157, 4294901760
  %v159 = vsub.f32 %v157, %v158
  %v160 = vand.u32 %v159, 4294901760
  %161 = vmatpush.msra.mxu0 %v160
  %v162 = vand.u32 %v60, 4294901760
  %163 = vmatmul.f32.gmra.mxu0 %v162
  %v164 = vpop.f32.mrf.mxu0
  %v165 = vadd.f32 %v96, %v164
  %v166 = vand.u32 %v63, 4294901760
  %167 = vmatmul.f32.gmra.mxu0 %v166
  %v168 = vpop.f32.mrf.mxu0
  %v169 = vadd.f32 %v104, %v168
  %170 = vdwg.mxu0
  %171 = vmatpush.msra.mxu0 0.0
  %172 = vmatpush.msra.mxu0 0.0
  %173 = vmatpush.msra.mxu0 0.0
  %174 = vmatpush.msra.mxu0 0.0
  %175 = vmatpush.msra.mxu0 0.0
  %176 = vmatpush.msra.mxu0 0.0
  %177 = vmatpush.msra.mxu0 0.0
  %178 = vmatpush.msra.mxu0 0.0
  %v179 = vand.u32 %v53, 4294901760
  %v180 = vsub.f32 %v53, %v179
  %181 = vmatpush.msra.mxu0 %v180
  %v182 = vand.u32 %v52, 4294901760
  %v183 = vsub.f32 %v52, %v182
  %184 = vmatpush.msra.mxu0 %v183
  %v185 = vand.u32 %v51, 4294901760
  %v186 = vsub.f32 %v51, %v185
  %187 = vmatpush.msra.mxu0 %v186
  %v188 = vand.u32 %v50, 4294901760
  %v189 = vsub.f32 %v50, %v188
  %190 = vmatpush.msra.mxu0 %v189
  %v191 = vand.u32 %v49, 4294901760
  %v192 = vsub.f32 %v49, %v191
  %193 = vmatpush.msra.mxu0 %v192
  %v194 = vand.u32 %v48, 4294901760
  %v195 = vsub.f32 %v48, %v194
  %196 = vmatpush.msra.mxu0 %v195
  %v197 = vand.u32 %v47, 4294901760
  %v198 = vsub.f32 %v47, %v197
  %199 = vmatpush.msra.mxu0 %v198
  %v200 = vand.u32 %v46, 4294901760
  %v201 = vsub.f32 %v46, %v200
  %202 = vmatpush.msra.mxu0 %v201
  %v203 = vand.u32 %v60, 4294901760
  %v204 = vsub.f32 %v60, %v203
  %205 = vmatmul.f32.gmra.mxu0 %v204
  %v206 = vpop.f32.mrf.mxu0
  %v207 = vadd.f32 %v165, %v206
  %v208 = vand.u32 %v63, 4294901760
  %v209 = vsub.f32 %v63, %v208
  %210 = vmatmul.f32.gmra.mxu0 %v209
  %v211 = vpop.f32.mrf.mxu0
  %v212 = vadd.f32 %v169, %v211
  %213 = vdwg.mxu0
  %214 = vmatpush.msra.mxu0 0.0
  %215 = vmatpush.msra.mxu0 0.0
  %216 = vmatpush.msra.mxu0 0.0
  %217 = vmatpush.msra.mxu0 0.0
  %218 = vmatpush.msra.mxu0 0.0
  %219 = vmatpush.msra.mxu0 0.0
  %220 = vmatpush.msra.mxu0 0.0
  %221 = vmatpush.msra.mxu0 0.0
  %v222 = vand.u32 %v53, 4294901760
  %223 = vmatpush.msra.mxu0 %v222
  %v224 = vand.u32 %v52, 4294901760
  %225 = vmatpush.msra.mxu0 %v224
  %v226 = vand.u32 %v51, 4294901760
  %227 = vmatpush.msra.mxu0 %v226
  %v228 = vand.u32 %v50, 4294901760
  %229 = vmatpush.msra.mxu0 %v228
  %v230 = vand.u32 %v49, 4294901760
  %231 = vmatpush.msra.mxu0 %v230
  %v232 = vand.u32 %v48, 4294901760
  %233 = vmatpush.msra.mxu0 %v232
  %v234 = vand.u32 %v47, 4294901760
  %235 = vmatpush.msra.mxu0 %v234
  %v236 = vand.u32 %v46, 4294901760
  %237 = vmatpush.msra.mxu0 %v236
  %v238 = vand.u32 %v60, 4294901760
  %v239 = vsub.f32 %v60, %v238
  %v240 = vand.u32 %v239, 4294901760
  %241 = vmatmul.f32.gmra.mxu0 %v240
  %v242 = vpop.f32.mrf.mxu0
  %v243 = vadd.f32 %v207, %v242
  %v244 = vand.u32 %v63, 4294901760
  %v245 = vsub.f32 %v63, %v244
  %v246 = vand.u32 %v245, 4294901760
  %247 = vmatmul.f32.gmra.mxu0 %v246
  %v248 = vpop.f32.mrf.mxu0
  %v249 = vadd.f32 %v212, %v248
  %250 = vdwg.mxu0
  %251 = vmatpush.msra.mxu0 0.0
  %252 = vmatpush.msra.mxu0 0.0
  %253 = vmatpush.msra.mxu0 0.0
  %254 = vmatpush.msra.mxu0 0.0
  %255 = vmatpush.msra.mxu0 0.0
  %256 = vmatpush.msra.mxu0 0.0
  %257 = vmatpush.msra.mxu0 0.0
  %258 = vmatpush.msra.mxu0 0.0
  %v259 = vand.u32 %v53, 4294901760
  %v260 = vsub.f32 %v53, %v259
  %v261 = vand.u32 %v260, 4294901760
  %262 = vmatpush.msra.mxu0 %v261
  %v263 = vand.u32 %v52, 4294901760
  %v264 = vsub.f32 %v52, %v263
  %v265 = vand.u32 %v264, 4294901760
  %266 = vmatpush.msra.mxu0 %v265
  %v267 = vand.u32 %v51, 4294901760
  %v268 = vsub.f32 %v51, %v267
  %v269 = vand.u32 %v268, 4294901760
  %270 = vmatpush.msra.mxu0 %v269
  %v271 = vand.u32 %v50, 4294901760
  %v272 = vsub.f32 %v50, %v271
  %v273 = vand.u32 %v272, 4294901760
  %274 = vmatpush.msra.mxu0 %v273
  %v275 = vand.u32 %v49, 4294901760
  %v276 = vsub.f32 %v49, %v275
  %v277 = vand.u32 %v276, 4294901760
  %278 = vmatpush.msra.mxu0 %v277
  %v279 = vand.u32 %v48, 4294901760
  %v280 = vsub.f32 %v48, %v279
  %v281 = vand.u32 %v280, 4294901760
  %282 = vmatpush.msra.mxu0 %v281
  %v283 = vand.u32 %v47, 4294901760
  %v284 = vsub.f32 %v47, %v283
  %v285 = vand.u32 %v284, 4294901760
  %286 = vmatpush.msra.mxu0 %v285
  %v287 = vand.u32 %v46, 4294901760
  %v288 = vsub.f32 %v46, %v287
  %v289 = vand.u32 %v288, 4294901760
  %290 = vmatpush.msra.mxu0 %v289
  %v291 = vand.u32 %v60, 4294901760
  %292 = vmatmul.f32.gmra.mxu0 %v291
  %v293 = vpop.f32.mrf.mxu0
  %v294 = vadd.f32 %v243, %v293
  %v295 = vand.u32 %v63, 4294901760
  %296 = vmatmul.f32.gmra.mxu0 %v295
  %v297 = vpop.f32.mrf.mxu0
  %v298 = vadd.f32 %v249, %v297
  %299 = vdwg.mxu0
  %300 = vmatpush.msra.mxu0 0.0
  %301 = vmatpush.msra.mxu0 0.0
  %302 = vmatpush.msra.mxu0 0.0
  %303 = vmatpush.msra.mxu0 0.0
  %304 = vmatpush.msra.mxu0 0.0
  %305 = vmatpush.msra.mxu0 0.0
  %306 = vmatpush.msra.mxu0 0.0
  %307 = vmatpush.msra.mxu0 0.0
  %v308 = vand.u32 %v53, 4294901760
  %309 = vmatpush.msra.mxu0 %v308
  %v310 = vand.u32 %v52, 4294901760
  %311 = vmatpush.msra.mxu0 %v310
  %v312 = vand.u32 %v51, 4294901760
  %313 = vmatpush.msra.mxu0 %v312
  %v314 = vand.u32 %v50, 4294901760
  %315 = vmatpush.msra.mxu0 %v314
  %v316 = vand.u32 %v49, 4294901760
  %317 = vmatpush.msra.mxu0 %v316
  %v318 = vand.u32 %v48, 4294901760
  %319 = vmatpush.msra.mxu0 %v318
  %v320 = vand.u32 %v47, 4294901760
  %321 = vmatpush.msra.mxu0 %v320
  %v322 = vand.u32 %v46, 4294901760
  %323 = vmatpush.msra.mxu0 %v322
  %v324 = vand.u32 %v60, 4294901760
  %325 = vmatmul.f32.gmra.mxu0 %v324
  %v326 = vpop.f32.mrf.mxu0
  %v327 = vadd.f32 %v294, %v326
  %v328 = vand.u32 %v63, 4294901760
  %329 = vmatmul.f32.gmra.mxu0 %v328
  %v330 = vpop.f32.mrf.mxu0
  %v331 = vadd.f32 %v298, %v330
  %332 = vdwg.mxu0
  %vm333 = vcmask 64512
  %334 = vst.msk [vmem:[%s5] sm:$0xff] %vm333, %v327
  %335 = vst.msk [vmem:[%s5 + $0x8] sm:$0xff] %vm333, %v331
  // Predicated region
  $region22: #{tpu_custom_call.1} parent=0 // pred_check
    _
  $region23: #{tpu_custom_call.1} parent=0 // pred_check_branch
    %337 = sbr.rel (0) target = $region25
  $region24: #{tpu_custom_call.1} parent=0 // pred_region
    _
  $region25: #{tpu_custom_call.1} parent=0 // pred_fallthru
    _
  // Predicated region
  $region26: #{tpu_custom_call.1} parent=0 // pred_check
    _
  $region27: #{tpu_custom_call.1} parent=0 // pred_check_branch
    %339 = sbr.rel (0) target = $region29
  $region28: #{tpu_custom_call.1} parent=0 // pred_region
    _
  $region29: #{tpu_custom_call.1} parent=0 // pred_fallthru
    _

</llo_original>
